<compile_context>
chip_gen: v7x
topology: tpu7x:2x2x1
jax: 0.10.0
libtpu: 0.0.40
codegen_flags: <defaults>
</compile_context>

<pallas_src>
import functools

import jax
import jax.numpy as jnp
from jax import lax
from jax.experimental import pallas as pl
from jax.experimental.pallas import tpu as pltpu


# ----------------------------------------------------------------------------
# Tiling / VMEM budgeting
# ----------------------------------------------------------------------------
def _vmem_capacity_bytes():
    try:
        return int(pltpu.get_tpu_info().vmem_capacity_bytes)
    except Exception:
        return 64 * 1024 * 1024  # conservative fallback (v7x per-core VMEM)


def _choose_tiling(ab, cd, itemsize):
    """Pick the K (reduction) tile and the scoped-VMEM limit.

    Budget = generation-aware usable VMEM minus the AB^2-sized residents
    (f32 accumulator, single-buffered target, output block + margin); the
    remainder goes to the double-buffered (AB, TK) feature tiles.
    """
    cap = _vmem_capacity_bytes()
    # Leave headroom for compiler-internal scratch, semaphores, etc.
    usable = min(int(cap * 0.75), cap - (8 << 20))

    fixed = (ab * ab * 4            # f32 accumulator (scratch or resident out)
             + ab * ab * 4          # target gram, single-buffered in VMEM
             + 2 * ab * ab * 4      # output block, worst case double-buffered
             + (2 << 20))           # margin

    if cd < 128:
        tk = cd                      # block equals full K extent; no masking
    else:
        avail = max(usable - fixed, 2 * ab * 128 * itemsize)
        tk = avail // (2 * ab * itemsize)       # double-buffered F tiles
        tk = max(128, (tk // 128) * 128)
        tk = min(tk, (cd // 128) * 128)         # never exceed K extent
    nk = pl.cdiv(cd, tk)

    need = fixed + 2 * ab * tk * itemsize + (4 << 20)
    vmem_limit = int(min(cap - (2 << 20), max(need, 32 << 20)))
    return int(tk), int(nk), vmem_limit


def _dot_precision(dtype):
    # Exact f32 Gram for f32 features (multi-pass MXU); native single-pass
    # bf16 MXU with f32 accumulation otherwise.
    return lax.Precision.HIGHEST if dtype == jnp.float32 else None


def _masked_block(f_ref, k, *, cd, tk, needs_mask):
    f_blk = f_ref[...]  # (AB, TK), native dtype
    if needs_mask:
        col = lax.broadcasted_iota(jnp.int32, f_blk.shape, 1)
        f_blk = jnp.where(col + k * tk < cd, f_blk, 0)
    return f_blk


# ----------------------------------------------------------------------------
# Gram-only kernel (used once, to build the detached target gram matrix).
# Accumulates directly into the resident output block; scales on the last step.
# ----------------------------------------------------------------------------
def _gram_kernel(f_ref, g_ref, *, scale, cd, tk, needs_mask, precision):
    k = pl.program_id(0)

    @pl.when(k == 0)
    def _():
        g_ref[...] = jnp.zeros_like(g_ref)

    f_blk = _masked_block(f_ref, k, cd=cd, tk=tk, needs_mask=needs_mask)
    g_ref[...] += lax.dot_general(
        f_blk, f_blk,
        dimension_numbers=(((1,), (1,)), ((), ())),   # F @ F.T, no transpose op
        preferred_element_type=jnp.float32,
        precision=precision)

    @pl.when(k == pl.num_programs(0) - 1)
    def _():
        g_ref[...] = g_ref[...] * scale


def gram_matrix_pallas(x):
    """Pallas gram matrix of an NCHW feature map x of shape (a, b, c, d)."""
    a, b, c, d = x.shape
    ab, cd = a * b, c * d
    f = x.reshape(ab, cd)
    tk, nk, vmem_limit = _choose_tiling(ab, cd, jnp.dtype(x.dtype).itemsize)
    needs_mask = (cd % tk) != 0
    scale = 1.0 / float(ab * cd)

    return pl.pallas_call(
        functools.partial(_gram_kernel, scale=scale, cd=cd, tk=tk,
                          needs_mask=needs_mask,
                          precision=_dot_precision(x.dtype)),
        out_shape=jax.ShapeDtypeStruct((ab, ab), jnp.float32),
        grid_spec=pltpu.PrefetchScalarGridSpec(
            num_scalar_prefetch=0,
            grid=(nk,),
            in_specs=[pl.BlockSpec((ab, tk), lambda k: (0, k))],
            out_specs=pl.BlockSpec((ab, ab), lambda k: (0, 0)),
        ),
        compiler_params=pltpu.CompilerParams(
            dimension_semantics=("arbitrary",),
            vmem_limit_bytes=vmem_limit),
    )(f)


# ----------------------------------------------------------------------------
# Fused forward kernel: gram accumulation + MSE vs target in the final step.
# Only the scalar loss leaves the chip (no G writeback / re-read).
# ----------------------------------------------------------------------------
def _style_loss_kernel(f_ref, t_ref, loss_ref, acc_ref, *,
                       scale, inv_n, cd, tk, needs_mask, precision):
    k = pl.program_id(0)

    @pl.when(k == 0)
    def _():
        acc_ref[...] = jnp.zeros_like(acc_ref)

    f_blk = _masked_block(f_ref, k, cd=cd, tk=tk, needs_mask=needs_mask)
    acc_ref[...] += lax.dot_general(
        f_blk, f_blk,
        dimension_numbers=(((1,), (1,)), ((), ())),
        preferred_element_type=jnp.float32,
        precision=precision)

    @pl.when(k == pl.num_programs(0) - 1)
    def _():
        diff = acc_ref[...] * scale - t_ref[...]
        loss_ref[0, 0] = jnp.sum(diff * diff) * inv_n


def style_loss_pallas(x, target_gram):
    """mse_loss(gram_matrix(x), target_gram) computed in one fused kernel."""
    a, b, c, d = x.shape
    ab, cd = a * b, c * d
    f = x.reshape(ab, cd)
    tk, nk, vmem_limit = _choose_tiling(ab, cd, jnp.dtype(x.dtype).itemsize)
    needs_mask = (cd % tk) != 0
    scale = 1.0 / float(ab * cd)
    inv_n = 1.0 / float(ab * ab)

    loss = pl.pallas_call(
        functools.partial(_style_loss_kernel, scale=scale, inv_n=inv_n,
                          cd=cd, tk=tk, needs_mask=needs_mask,
                          precision=_dot_precision(x.dtype)),
        out_shape=jax.ShapeDtypeStruct((1, 1), jnp.float32),
        grid_spec=pltpu.PrefetchScalarGridSpec(
            num_scalar_prefetch=0,
            grid=(nk,),
            in_specs=[
                pl.BlockSpec((ab, tk), lambda k: (0, k)),
                # Target is index-constant and only needed in the epilogue:
                # keep the whole (AB, AB) array resident in VMEM once
                # (single-buffered) instead of a double-buffered stream.
                pl.BlockSpec(memory_space=pltpu.MemorySpace.VMEM),
            ],
            out_specs=pl.BlockSpec(memory_space=pltpu.MemorySpace.SMEM),
            scratch_shapes=[pltpu.VMEM((ab, ab), jnp.float32)],
        ),
        compiler_params=pltpu.CompilerParams(
            dimension_semantics=("arbitrary",),
            vmem_limit_bytes=vmem_limit),
    )(f, target_gram.astype(jnp.float32))
    return loss[0, 0]


# ----------------------------------------------------------------------------
# StyleLoss module (JAX/Pallas equivalent of the PyTorch nn.Module).
# ----------------------------------------------------------------------------
class StyleLoss:
    def __init__(self, target_feature):
        # target gram matrix is fixed ("detached") at init.
        self.target = jax.lax.stop_gradient(gram_matrix_pallas(target_feature))
        self.loss = None

    def __call__(self, x):
        self.loss = style_loss_pallas(x, self.target)
        return x  # forward is identity on the activations


# Pure-JAX reference for correctness checks.
def _gram_ref(x):
    a, b, c, d = x.shape
    f = x.reshape(a * b, c * d).astype(jnp.float32)
    g = jnp.dot(f, f.T, precision=lax.Precision.HIGHEST)
    return g / (a * b * c * d)


def _loss_ref(x, target_feature):
    return jnp.mean((_gram_ref(x) - _gram_ref(target_feature)) ** 2)


if __name__ == "__main__":
    key = jax.random.PRNGKey(0)
    k1, k2, k3, k4, k5, k6 = jax.random.split(key, 6)

    # Case 1: small NCHW feature maps, c*d a multiple of 128.
    tgt1 = jax.random.normal(k1, (2, 4, 16, 16), dtype=jnp.float32)
    x1 = jax.random.normal(k2, (2, 4, 16, 16), dtype=jnp.float32)
    sl1 = StyleLoss(tgt1)
    out1 = sl1(x1)
    jax.block_until_ready(out1)
    jax.block_until_ready(sl1.loss)
    ref1 = _loss_ref(x1, tgt1)
    assert out1.shape == x1.shape and jnp.allclose(out1, x1)
    assert jnp.allclose(sl1.loss, ref1, rtol=1e-4, atol=1e-7), (sl1.loss, ref1)

    # Case 2: c*d NOT a multiple of 128 (exercises in-kernel masking path).
    tgt2 = jax.random.normal(k3, (2, 8, 12, 12), dtype=jnp.float32)
    x2 = jax.random.normal(k4, (2, 8, 12, 12), dtype=jnp.float32)
    sl2 = StyleLoss(tgt2)
    out2 = sl2(x2)
    jax.block_until_ready(out2)
    jax.block_until_ready(sl2.loss)
    ref2 = _loss_ref(x2, tgt2)
    assert out2.shape == x2.shape and jnp.allclose(out2, x2)
    assert jnp.allclose(sl2.loss, ref2, rtol=1e-4, atol=1e-7), (sl2.loss, ref2)

    # Case 3: bf16 feature maps (native single-pass MXU path).
    tgt3 = jax.random.normal(k5, (2, 16, 16, 16), dtype=jnp.bfloat16)
    x3 = jax.random.normal(k6, (2, 16, 16, 16), dtype=jnp.bfloat16)
    sl3 = StyleLoss(tgt3)
    out3 = sl3(x3)
    jax.block_until_ready(out3)
    jax.block_until_ready(sl3.loss)
    ref3 = _loss_ref(x3, tgt3)
    assert out3.shape == x3.shape and jnp.allclose(out3, x3)
    assert jnp.allclose(sl3.loss, ref3, rtol=1e-2, atol=1e-6), (sl3.loss, ref3)

    print("KERNEL_OK")
</pallas_src>

<mosaic_0001>
module attributes {stable_mosaic.version = 11 : i64} {
  func.func @_gram_kernel(%arg0: i32, %arg1: memref<8x256xf32, #tpu.memory_space<vmem>>, %arg2: memref<8x8xf32, #tpu.memory_space<vmem>>) attributes {dimension_semantics = [#tpu.dimension_semantics<arbitrary>], iteration_bounds = array<i64: 1>, scalar_prefetch = 0 : i64, scratch_operands = 0 : i64, tpu.core_type = #tpu.core_type<tc>, window_params = [{transform_indices = @transform_0, window_bounds = array<i64: 8, 256>}, {pipeline_mode = #tpu.pipeline_mode<synchronous>, transform_indices = @transform_1, window_bounds = array<i64: 8, 8>}]} {
    %c0_i32 = arith.constant 0 : i32
    %0 = arith.cmpi eq, %arg0, %c0_i32 : i32
    %1 = arith.extui %0 : i1 to i32
    %c0_i32_0 = arith.constant 0 : i32
    %2 = arith.cmpi ne, %1, %c0_i32_0 : i32
    scf.if %2 {
      %cst_8 = arith.constant 0.000000e+00 : f32
      %11 = vector.broadcast %cst_8 : f32 to vector<8x8xf32>
      %c0_9 = arith.constant 0 : index
      %c0_10 = arith.constant 0 : index
      %12 = vector.load %arg2[%c0_9, %c0_10] : memref<8x8xf32, #tpu.memory_space<vmem>>, vector<8x8xf32>
      tpu.vector_store %arg2[%c0_9, %c0_10], %11 {strides = array<i32>} : memref<8x8xf32, #tpu.memory_space<vmem>>, vector<8x8xf32>,
    } else {
    }
    %c0 = arith.constant 0 : index
    %c0_1 = arith.constant 0 : index
    %3 = vector.load %arg1[%c0, %c0_1] : memref<8x256xf32, #tpu.memory_space<vmem>>, vector<8x256xf32>
    %c0_2 = arith.constant 0 : index
    %c0_3 = arith.constant 0 : index
    %4 = vector.load %arg2[%c0_2, %c0_3] : memref<8x8xf32, #tpu.memory_space<vmem>>, vector<8x8xf32>
    %cst = arith.constant dense<0.000000e+00> : vector<8x8xf32>
    %5 = tpu.matmul %3, %3, %cst {dimension_numbers = #tpu.dot_dimension_numbers<[1], [1], [0], [0], [0, 0, 1, 0], [], []>, precision = #tpu.contract_precision<fp32>} : vector<8x256xf32>, vector<8x256xf32>, vector<8x8xf32> -> vector<8x8xf32>
    %6 = arith.addf %4, %5 : vector<8x8xf32>
    %c0_4 = arith.constant 0 : index
    %c0_5 = arith.constant 0 : index
    %7 = vector.load %arg2[%c0_4, %c0_5] : memref<8x8xf32, #tpu.memory_space<vmem>>, vector<8x8xf32>
    tpu.vector_store %arg2[%c0_4, %c0_5], %6 {strides = array<i32>} : memref<8x8xf32, #tpu.memory_space<vmem>>, vector<8x8xf32>,
    %c0_i32_6 = arith.constant 0 : i32
    %8 = arith.cmpi eq, %arg0, %c0_i32_6 : i32
    %9 = arith.extui %8 : i1 to i32
    %c0_i32_7 = arith.constant 0 : i32
    %10 = arith.cmpi ne, %9, %c0_i32_7 : i32
    scf.if %10 {
      %c0_8 = arith.constant 0 : index
      %c0_9 = arith.constant 0 : index
      %11 = vector.load %arg2[%c0_8, %c0_9] : memref<8x8xf32, #tpu.memory_space<vmem>>, vector<8x8xf32>
      %cst_10 = arith.constant 4.8828125E-4 : f32
      %12 = vector.broadcast %cst_10 : f32 to vector<8x8xf32>
      %13 = arith.mulf %11, %12 : vector<8x8xf32>
      %c0_11 = arith.constant 0 : index
      %c0_12 = arith.constant 0 : index
      %14 = vector.load %arg2[%c0_11, %c0_12] : memref<8x8xf32, #tpu.memory_space<vmem>>, vector<8x8xf32>
      tpu.vector_store %arg2[%c0_11, %c0_12], %13 {strides = array<i32>} : memref<8x8xf32, #tpu.memory_space<vmem>>, vector<8x8xf32>,
    } else {
    }
    return
  }
  func.func @transform_0(%arg0: i32) -> (i32, i32) {
    %c0_i32 = arith.constant 0 : i32
    %c0_i32_0 = arith.constant 0 : i32
    return %c0_i32, %arg0 : i32, i32
  }
  func.func @transform_1(%arg0: i32) -> (i32, i32) {
    %c0_i32 = arith.constant 0 : i32
    %c0_i32_0 = arith.constant 0 : i32
    %c0_i32_1 = arith.constant 0 : i32
    return %c0_i32, %c0_i32_0 : i32, i32
  }
}

</mosaic_0001>

<llo_original>
// kernel: tpu_custom_call.1
$region0: #{tpu_custom_call.1}
  #allocation0 [shape = 'u32[]', space=smem, size = 0x4, offset = 0x4, fixed_abs, tag = 'smem constant byte address 0x4 - core index']
  #allocation1 [shape = 'u32[144,128]{1,0:T(1,128)}', space=vmem, size = 0x12000, scoped, tag = 'internal scratch']
  %s0 = inlined_call_operand.hbm [shape: f32[8,256], index: 0, kind: input, shape index: {}]
  %s1 = inlined_call_operand.hbm [shape: f32[8,8], index: 1, kind: output, shape index: {}]
  %s2 = sld [smem:[#allocation0]]
  $region26: #{tpu_custom_call.1} parent=0
    _
  %s4 = ssub.s32 1, %s2
  %s5 = scalar_select 0, %s4, %s2
  $region1: #{tpu_custom_call.1} parent=0
    #allocation2 [shape = 'u8[8192]{0}', space=vmem, size = 0x2000, scoped, tag = 'input window, operand 0, single buffered']
    #allocation3 [shape = 's32[1]{0}', space=sflag, size = 0x4, scoped, tag = 'scoped memory for tpu_custom_call.1']
    #allocation4 [shape = 's32[1]{0}', space=sflag, size = 0x4, scoped, tag = 'scoped memory for tpu_custom_call.1']
    #allocation5 [shape = 'u8[4096]{0}', space=vmem, size = 0x1000, scoped, tag = 'output window, operand 0, single buffered']
    %6 = vsyncpa [#allocation3], 0
    %7 = vsyncpa [#allocation4], 0
    // Predicated region
    $region2: #{tpu_custom_call.1} parent=1 // pred_check
      _
    $region3: #{tpu_custom_call.1} parent=1 // pred_check_branch
      %9 = sbr.rel (0) target = $region5
    $region4: #{tpu_custom_call.1} parent=1 // pred_region
      %s11 = ssub.s32 256, 256
      %12 = vsyncadd [#allocation3], %s11
      %s14 = sshll.u32 [#allocation2], 4
      %s15 = int_to_ptr.vmem [resolvable:$true] %s14
      %17 = dma.hbm_to_vmem [thread:$0]  %s0, 256, %s15, [#allocation3]
    $region5: #{tpu_custom_call.1} parent=1 // pred_fallthru
      _
    // Predicated region
    $region6: #{tpu_custom_call.1} parent=1 // pred_check
      _
    $region7: #{tpu_custom_call.1} parent=1 // pred_check_branch
      %19 = sbr.rel (0) target = $region9
    $region8: #{tpu_custom_call.1} parent=1 // pred_region
      %20 = dma.done [#allocation3], 256
    $region9: #{tpu_custom_call.1} parent=1 // pred_fallthru
      _
    %p21 = scmp.eq.s32.totalorder 0, 0
    // Predicated region
    $region10: #{tpu_custom_call.1} parent=1 // pred_check
      %p22 = pneg %p21
    $region11: #{tpu_custom_call.1} parent=1 // pred_check_branch
      %24 = sbr.rel (%p22) target = $region13
    $region12: #{tpu_custom_call.1} parent=1 // pred_region
      %vm25 = vcmask 64512
      %26 = vst.msk [vmem:[#allocation5] sm:$0xff] %vm25, 0.0
    $region13: #{tpu_custom_call.1} parent=1 // pred_fallthru
      _
    %v27 = vld [vmem:[#allocation2] sm:$0xff]
    %v28 = vld [vmem:[#allocation2 + $0x8] sm:$0xff]
    %v29 = vld [vmem:[#allocation5] sm:$0xff]
    %v30 = vand.u32 %v28, 4294901760
    %31 = vmatprep.subr.mxu0 %v30
    %v32 = vand.u32 %v27, 4294901760
    %33 = vmatpush1.xpose.msra.mxu0 %v32
    %34 = vmatprep.subr.mxu0 0.0
    %35 = vmatpush1.xpose.msra.mxu0 0.0
    %36 = vmatprep.subr.mxu0 0.0
    %37 = vmatpush1.xpose.msra.mxu0 0.0
    %38 = vmatprep.subr.mxu0 0.0
    %39 = vmatpush1.xpose.msra.mxu0 0.0
    %40 = vmatprep.subr.mxu0 0.0
    %41 = vmatpush1.xpose.msra.mxu0 0.0
    %42 = vmatprep.subr.mxu0 0.0
    %43 = vmatpush1.xpose.msra.mxu0 0.0
    %44 = vmatprep.subr.mxu0 0.0
    %45 = vmatpush1.xpose.msra.mxu0 0.0
    %46 = vmatprep.subr.mxu0 0.0
    %47 = vmatpush1.xpose.msra.mxu0 0.0
    %48 = vmatprep.subr.mxu0 0.0
    %49 = vmatpush1.xpose.msra.mxu0 0.0
    %50 = vmatprep.subr.mxu0 0.0
    %51 = vmatpush1.xpose.msra.mxu0 0.0
    %52 = vmatprep.subr.mxu0 0.0
    %53 = vmatpush1.xpose.msra.mxu0 0.0
    %54 = vmatprep.subr.mxu0 0.0
    %55 = vmatpush1.xpose.msra.mxu0 0.0
    %56 = vmatprep.subr.mxu0 0.0
    %57 = vmatpush1.xpose.msra.mxu0 0.0
    %58 = vmatprep.subr.mxu0 0.0
    %59 = vmatpush1.xpose.msra.mxu0 0.0
    %60 = vmatprep.subr.mxu0 0.0
    %61 = vmatpush1.xpose.msra.mxu0 0.0
    %62 = vmatprep.subr.mxu0 0.0
    %63 = vmatpush1.xpose.msra.mxu0 0.0
    %64 = vmatprep.subr.mxu0 0.0
    %65 = vmatpush1.xpose.msra.mxu0 0.0
    %66 = vmatprep.subr.mxu0 0.0
    %67 = vmatpush1.xpose.msra.mxu0 0.0
    %68 = vmatprep.subr.mxu0 0.0
    %69 = vmatpush1.xpose.msra.mxu0 0.0
    %70 = vmatprep.subr.mxu0 0.0
    %71 = vmatpush1.xpose.msra.mxu0 0.0
    %72 = vmatprep.subr.mxu0 0.0
    %73 = vmatpush1.xpose.msra.mxu0 0.0
    %74 = vmatprep.subr.mxu0 0.0
    %75 = vmatpush1.xpose.msra.mxu0 0.0
    %76 = vmatprep.subr.mxu0 0.0
    %77 = vmatpush1.xpose.msra.mxu0 0.0
    %78 = vmatprep.subr.mxu0 0.0
    %79 = vmatpush1.xpose.msra.mxu0 0.0
    %80 = vmatprep.subr.mxu0 0.0
    %81 = vmatpush1.xpose.msra.mxu0 0.0
    %82 = vmatprep.subr.mxu0 0.0
    %83 = vmatpush1.xpose.msra.mxu0 0.0
    %84 = vmatprep.subr.mxu0 0.0
    %85 = vmatpush1.xpose.msra.mxu0 0.0
    %86 = vmatprep.subr.mxu0 0.0
    %87 = vmatpush1.xpose.msra.mxu0 0.0
    %88 = vmatprep.subr.mxu0 0.0
    %89 = vmatpush1.xpose.msra.mxu0 0.0
    %90 = vmatprep.subr.mxu0 0.0
    %91 = vmatpush1.xpose.msra.mxu0 0.0
    %92 = vmatprep.subr.mxu0 0.0
    %93 = vmatpush1.xpose.msra.mxu0 0.0
    %94 = vmatprep.subr.mxu0 0.0
    %95 = vmatpush1.xpose.msra.mxu0 0.0
    %v96 = vand.u32 %v28, 4294901760
    %v97 = vsub.f32 %v28, %v96
    %v98 = vand.u32 %v97, 4294901760
    %v99 = vsub.f32 %v97, %v98
    %v100 = vand.u32 %v99, 4294901760
    %101 = vmatprep.mubr.f32.mxu0 %v100
    %v102 = vand.u32 %v27, 4294901760
    %v103 = vsub.f32 %v27, %v102
    %v104 = vand.u32 %v103, 4294901760
    %v105 = vsub.f32 %v103, %v104
    %v106 = vand.u32 %v105, 4294901760
    %107 = vmatmul.mubr.f32.gmra.mrb[0].mxu0 %v106
    %v108 = vpop.f32.mrb[0].mxu0
    %v109 = vadd.f32 0.0, %v108
    %v110 = vpop.f32.mrb[0].mxu0
    %111 = vdwg.mxu0
    %v112 = vand.u32 %v28, 4294901760
    %v113 = vsub.f32 %v28, %v112
    %v114 = vand.u32 %v113, 4294901760
    %v115 = vsub.f32 %v113, %v114
    %v116 = vand.u32 %v115, 4294901760
    %117 = vmatprep.subr.mxu0 %v116
    %v118 = vand.u32 %v27, 4294901760
    %v119 = vsub.f32 %v27, %v118
    %v120 = vand.u32 %v119, 4294901760
    %v121 = vsub.f32 %v119, %v120
    %v122 = vand.u32 %v121, 4294901760
    %123 = vmatpush1.xpose.msra.mxu0 %v122
    %124 = vmatprep.subr.mxu0 0.0
    %125 = vmatpush1.xpose.msra.mxu0 0.0
    %126 = vmatprep.subr.mxu0 0.0
    %127 = vmatpush1.xpose.msra.mxu0 0.0
    %128 = vmatprep.subr.mxu0 0.0
    %129 = vmatpush1.xpose.msra.mxu0 0.0
    %130 = vmatprep.subr.mxu0 0.0
    %131 = vmatpush1.xpose.msra.mxu0 0.0
    %132 = vmatprep.subr.mxu0 0.0
    %133 = vmatpush1.xpose.msra.mxu0 0.0
    %134 = vmatprep.subr.mxu0 0.0
    %135 = vmatpush1.xpose.msra.mxu0 0.0
    %136 = vmatprep.subr.mxu0 0.0
    %137 = vmatpush1.xpose.msra.mxu0 0.0
    %138 = vmatprep.subr.mxu0 0.0
    %139 = vmatpush1.xpose.msra.mxu0 0.0
    %140 = vmatprep.subr.mxu0 0.0
    %141 = vmatpush1.xpose.msra.mxu0 0.0
    %142 = vmatprep.subr.mxu0 0.0
    %143 = vmatpush1.xpose.msra.mxu0 0.0
    %144 = vmatprep.subr.mxu0 0.0
    %145 = vmatpush1.xpose.msra.mxu0 0.0
    %146 = vmatprep.subr.mxu0 0.0
    %147 = vmatpush1.xpose.msra.mxu0 0.0
    %148 = vmatprep.subr.mxu0 0.0
    %149 = vmatpush1.xpose.msra.mxu0 0.0
    %150 = vmatprep.subr.mxu0 0.0
    %151 = vmatpush1.xpose.msra.mxu0 0.0
    %152 = vmatprep.subr.mxu0 0.0
    %153 = vmatpush1.xpose.msra.mxu0 0.0
    %154 = vmatprep.subr.mxu0 0.0
    %155 = vmatpush1.xpose.msra.mxu0 0.0
    %156 = vmatprep.subr.mxu0 0.0
    %157 = vmatpush1.xpose.msra.mxu0 0.0
    %158 = vmatprep.subr.mxu0 0.0
    %159 = vmatpush1.xpose.msra.mxu0 0.0
    %160 = vmatprep.subr.mxu0 0.0
    %161 = vmatpush1.xpose.msra.mxu0 0.0
    %162 = vmatprep.subr.mxu0 0.0
    %163 = vmatpush1.xpose.msra.mxu0 0.0
    %164 = vmatprep.subr.mxu0 0.0
    %165 = vmatpush1.xpose.msra.mxu0 0.0
    %166 = vmatprep.subr.mxu0 0.0
    %167 = vmatpush1.xpose.msra.mxu0 0.0
    %168 = vmatprep.subr.mxu0 0.0
    %169 = vmatpush1.xpose.msra.mxu0 0.0
    %170 = vmatprep.subr.mxu0 0.0
    %171 = vmatpush1.xpose.msra.mxu0 0.0
    %172 = vmatprep.subr.mxu0 0.0
    %173 = vmatpush1.xpose.msra.mxu0 0.0
    %174 = vmatprep.subr.mxu0 0.0
    %175 = vmatpush1.xpose.msra.mxu0 0.0
    %176 = vmatprep.subr.mxu0 0.0
    %177 = vmatpush1.xpose.msra.mxu0 0.0
    %178 = vmatprep.subr.mxu0 0.0
    %179 = vmatpush1.xpose.msra.mxu0 0.0
    %180 = vmatprep.subr.mxu0 0.0
    %181 = vmatpush1.xpose.msra.mxu0 0.0
    %182 = vmatprep.subr.mxu0 0.0
    %183 = vmatpush1.xpose.msra.mxu0 0.0
    %184 = vmatprep.subr.mxu0 0.0
    %185 = vmatpush1.xpose.msra.mxu0 0.0
    %v186 = vand.u32 %v28, 4294901760
    %187 = vmatprep.mubr.f32.mxu0 %v186
    %v188 = vand.u32 %v27, 4294901760
    %189 = vmatmul.mubr.f32.gmra.mrb[0].mxu0 %v188
    %v190 = vpop.f32.mrb[0].mxu0
    %v191 = vadd.f32 %v109, %v190
    %v192 = vpop.f32.mrb[0].mxu0
    %193 = vdwg.mxu0
    %v194 = vand.u32 %v28, 4294901760
    %v195 = vsub.f32 %v28, %v194
    %196 = vmatprep.subr.mxu0 %v195
    %v197 = vand.u32 %v27, 4294901760
    %v198 = vsub.f32 %v27, %v197
    %199 = vmatpush1.xpose.msra.mxu0 %v198
    %200 = vmatprep.subr.mxu0 0.0
    %201 = vmatpush1.xpose.msra.mxu0 0.0
    %202 = vmatprep.subr.mxu0 0.0
    %203 = vmatpush1.xpose.msra.mxu0 0.0
    %204 = vmatprep.subr.mxu0 0.0
    %205 = vmatpush1.xpose.msra.mxu0 0.0
    %206 = vmatprep.subr.mxu0 0.0
    %207 = vmatpush1.xpose.msra.mxu0 0.0
    %208 = vmatprep.subr.mxu0 0.0
    %209 = vmatpush1.xpose.msra.mxu0 0.0
    %210 = vmatprep.subr.mxu0 0.0
    %211 = vmatpush1.xpose.msra.mxu0 0.0
    %212 = vmatprep.subr.mxu0 0.0
    %213 = vmatpush1.xpose.msra.mxu0 0.0
    %214 = vmatprep.subr.mxu0 0.0
    %215 = vmatpush1.xpose.msra.mxu0 0.0
    %216 = vmatprep.subr.mxu0 0.0
    %217 = vmatpush1.xpose.msra.mxu0 0.0
    %218 = vmatprep.subr.mxu0 0.0
    %219 = vmatpush1.xpose.msra.mxu0 0.0
    %220 = vmatprep.subr.mxu0 0.0
    %221 = vmatpush1.xpose.msra.mxu0 0.0
    %222 = vmatprep.subr.mxu0 0.0
    %223 = vmatpush1.xpose.msra.mxu0 0.0
    %224 = vmatprep.subr.mxu0 0.0
    %225 = vmatpush1.xpose.msra.mxu0 0.0
    %226 = vmatprep.subr.mxu0 0.0
    %227 = vmatpush1.xpose.msra.mxu0 0.0
    %228 = vmatprep.subr.mxu0 0.0
    %229 = vmatpush1.xpose.msra.mxu0 0.0
    %230 = vmatprep.subr.mxu0 0.0
    %231 = vmatpush1.xpose.msra.mxu0 0.0
    %232 = vmatprep.subr.mxu0 0.0
    %233 = vmatpush1.xpose.msra.mxu0 0.0
    %234 = vmatprep.subr.mxu0 0.0
    %235 = vmatpush1.xpose.msra.mxu0 0.0
    %236 = vmatprep.subr.mxu0 0.0
    %237 = vmatpush1.xpose.msra.mxu0 0.0
    %238 = vmatprep.subr.mxu0 0.0
    %239 = vmatpush1.xpose.msra.mxu0 0.0
    %240 = vmatprep.subr.mxu0 0.0
    %241 = vmatpush1.xpose.msra.mxu0 0.0
    %242 = vmatprep.subr.mxu0 0.0
    %243 = vmatpush1.xpose.msra.mxu0 0.0
    %244 = vmatprep.subr.mxu0 0.0
    %245 = vmatpush1.xpose.msra.mxu0 0.0
    %246 = vmatprep.subr.mxu0 0.0
    %247 = vmatpush1.xpose.msra.mxu0 0.0
    %248 = vmatprep.subr.mxu0 0.0
    %249 = vmatpush1.xpose.msra.mxu0 0.0
    %250 = vmatprep.subr.mxu0 0.0
    %251 = vmatpush1.xpose.msra.mxu0 0.0
    %252 = vmatprep.subr.mxu0 0.0
    %253 = vmatpush1.xpose.msra.mxu0 0.0
    %254 = vmatprep.subr.mxu0 0.0
    %255 = vmatpush1.xpose.msra.mxu0 0.0
    %256 = vmatprep.subr.mxu0 0.0
    %257 = vmatpush1.xpose.msra.mxu0 0.0
    %258 = vmatprep.subr.mxu0 0.0
    %259 = vmatpush1.xpose.msra.mxu0 0.0
    %260 = vmatprep.subr.mxu0 0.0
    %261 = vmatpush1.xpose.msra.mxu0 0.0
    %v262 = vand.u32 %v28, 4294901760
    %v263 = vsub.f32 %v28, %v262
    %264 = vmatprep.mubr.f32.mxu0 %v263
    %v265 = vand.u32 %v27, 4294901760
    %v266 = vsub.f32 %v27, %v265
    %267 = vmatmul.mubr.f32.gmra.mrb[0].mxu0 %v266
    %v268 = vpop.f32.mrb[0].mxu0
    %v269 = vadd.f32 %v191, %v268
    %v270 = vpop.f32.mrb[0].mxu0
    %271 = vdwg.mxu0
    %v272 = vand.u32 %v28, 4294901760
    %273 = vmatprep.subr.mxu0 %v272
    %v274 = vand.u32 %v27, 4294901760
    %275 = vmatpush1.xpose.msra.mxu0 %v274
    %276 = vmatprep.subr.mxu0 0.0
    %277 = vmatpush1.xpose.msra.mxu0 0.0
    %278 = vmatprep.subr.mxu0 0.0
    %279 = vmatpush1.xpose.msra.mxu0 0.0
    %280 = vmatprep.subr.mxu0 0.0
    %281 = vmatpush1.xpose.msra.mxu0 0.0
    %282 = vmatprep.subr.mxu0 0.0
    %283 = vmatpush1.xpose.msra.mxu0 0.0
    %284 = vmatprep.subr.mxu0 0.0
    %285 = vmatpush1.xpose.msra.mxu0 0.0
    %286 = vmatprep.subr.mxu0 0.0
    %287 = vmatpush1.xpose.msra.mxu0 0.0
    %288 = vmatprep.subr.mxu0 0.0
    %289 = vmatpush1.xpose.msra.mxu0 0.0
    %290 = vmatprep.subr.mxu0 0.0
    %291 = vmatpush1.xpose.msra.mxu0 0.0
    %292 = vmatprep.subr.mxu0 0.0
    %293 = vmatpush1.xpose.msra.mxu0 0.0
    %294 = vmatprep.subr.mxu0 0.0
    %295 = vmatpush1.xpose.msra.mxu0 0.0
    %296 = vmatprep.subr.mxu0 0.0
    %297 = vmatpush1.xpose.msra.mxu0 0.0
    %298 = vmatprep.subr.mxu0 0.0
    %299 = vmatpush1.xpose.msra.mxu0 0.0
    %300 = vmatprep.subr.mxu0 0.0
    %301 = vmatpush1.xpose.msra.mxu0 0.0
    %302 = vmatprep.subr.mxu0 0.0
    %303 = vmatpush1.xpose.msra.mxu0 0.0
    %304 = vmatprep.subr.mxu0 0.0
    %305 = vmatpush1.xpose.msra.mxu0 0.0
    %306 = vmatprep.subr.mxu0 0.0
    %307 = vmatpush1.xpose.msra.mxu0 0.0
    %308 = vmatprep.subr.mxu0 0.0
    %309 = vmatpush1.xpose.msra.mxu0 0.0
    %310 = vmatprep.subr.mxu0 0.0
    %311 = vmatpush1.xpose.msra.mxu0 0.0
    %312 = vmatprep.subr.mxu0 0.0
    %313 = vmatpush1.xpose.msra.mxu0 0.0
    %314 = vmatprep.subr.mxu0 0.0
    %315 = vmatpush1.xpose.msra.mxu0 0.0
    %316 = vmatprep.subr.mxu0 0.0
    %317 = vmatpush1.xpose.msra.mxu0 0.0
    %318 = vmatprep.subr.mxu0 0.0
    %319 = vmatpush1.xpose.msra.mxu0 0.0
    %320 = vmatprep.subr.mxu0 0.0
    %321 = vmatpush1.xpose.msra.mxu0 0.0
    %322 = vmatprep.subr.mxu0 0.0
    %323 = vmatpush1.xpose.msra.mxu0 0.0
    %324 = vmatprep.subr.mxu0 0.0
    %325 = vmatpush1.xpose.msra.mxu0 0.0
    %326 = vmatprep.subr.mxu0 0.0
    %327 = vmatpush1.xpose.msra.mxu0 0.0
    %328 = vmatprep.subr.mxu0 0.0
    %329 = vmatpush1.xpose.msra.mxu0 0.0
    %330 = vmatprep.subr.mxu0 0.0
    %331 = vmatpush1.xpose.msra.mxu0 0.0
    %332 = vmatprep.subr.mxu0 0.0
    %333 = vmatpush1.xpose.msra.mxu0 0.0
    %334 = vmatprep.subr.mxu0 0.0
    %335 = vmatpush1.xpose.msra.mxu0 0.0
    %336 = vmatprep.subr.mxu0 0.0
    %337 = vmatpush1.xpose.msra.mxu0 0.0
    %v338 = vand.u32 %v28, 4294901760
    %v339 = vsub.f32 %v28, %v338
    %v340 = vand.u32 %v339, 4294901760
    %341 = vmatprep.mubr.f32.mxu0 %v340
    %v342 = vand.u32 %v27, 4294901760
    %v343 = vsub.f32 %v27, %v342
    %v344 = vand.u32 %v343, 4294901760
    %345 = vmatmul.mubr.f32.gmra.mrb[0].mxu0 %v344
    %v346 = vpop.f32.mrb[0].mxu0
    %v347 = vadd.f32 %v269, %v346
    %v348 = vpop.f32.mrb[0].mxu0
    %349 = vdwg.mxu0
    %v350 = vand.u32 %v28, 4294901760
    %v351 = vsub.f32 %v28, %v350
    %v352 = vand.u32 %v351, 4294901760
    %353 = vmatprep.subr.mxu0 %v352
    %v354 = vand.u32 %v27, 4294901760
    %v355 = vsub.f32 %v27, %v354
    %v356 = vand.u32 %v355, 4294901760
    %357 = vmatpush1.xpose.msra.mxu0 %v356
    %358 = vmatprep.subr.mxu0 0.0
    %359 = vmatpush1.xpose.msra.mxu0 0.0
    %360 = vmatprep.subr.mxu0 0.0
    %361 = vmatpush1.xpose.msra.mxu0 0.0
    %362 = vmatprep.subr.mxu0 0.0
    %363 = vmatpush1.xpose.msra.mxu0 0.0
    %364 = vmatprep.subr.mxu0 0.0
    %365 = vmatpush1.xpose.msra.mxu0 0.0
    %366 = vmatprep.subr.mxu0 0.0
    %367 = vmatpush1.xpose.msra.mxu0 0.0
    %368 = vmatprep.subr.mxu0 0.0
    %369 = vmatpush1.xpose.msra.mxu0 0.0
    %370 = vmatprep.subr.mxu0 0.0
    %371 = vmatpush1.xpose.msra.mxu0 0.0
    %372 = vmatprep.subr.mxu0 0.0
    %373 = vmatpush1.xpose.msra.mxu0 0.0
    %374 = vmatprep.subr.mxu0 0.0
    %375 = vmatpush1.xpose.msra.mxu0 0.0
    %376 = vmatprep.subr.mxu0 0.0
    %377 = vmatpush1.xpose.msra.mxu0 0.0
    %378 = vmatprep.subr.mxu0 0.0
    %379 = vmatpush1.xpose.msra.mxu0 0.0
    %380 = vmatprep.subr.mxu0 0.0
    %381 = vmatpush1.xpose.msra.mxu0 0.0
    %382 = vmatprep.subr.mxu0 0.0
    %383 = vmatpush1.xpose.msra.mxu0 0.0
    %384 = vmatprep.subr.mxu0 0.0
    %385 = vmatpush1.xpose.msra.mxu0 0.0
    %386 = vmatprep.subr.mxu0 0.0
    %387 = vmatpush1.xpose.msra.mxu0 0.0
    %388 = vmatprep.subr.mxu0 0.0
    %389 = vmatpush1.xpose.msra.mxu0 0.0
    %390 = vmatprep.subr.mxu0 0.0
    %391 = vmatpush1.xpose.msra.mxu0 0.0
    %392 = vmatprep.subr.mxu0 0.0
    %393 = vmatpush1.xpose.msra.mxu0 0.0
    %394 = vmatprep.subr.mxu0 0.0
    %395 = vmatpush1.xpose.msra.mxu0 0.0
    %396 = vmatprep.subr.mxu0 0.0
    %397 = vmatpush1.xpose.msra.mxu0 0.0
    %398 = vmatprep.subr.mxu0 0.0
    %399 = vmatpush1.xpose.msra.mxu0 0.0
    %400 = vmatprep.subr.mxu0 0.0
    %401 = vmatpush1.xpose.msra.mxu0 0.0
    %402 = vmatprep.subr.mxu0 0.0
    %403 = vmatpush1.xpose.msra.mxu0 0.0
    %404 = vmatprep.subr.mxu0 0.0
    %405 = vmatpush1.xpose.msra.mxu0 0.0
    %406 = vmatprep.subr.mxu0 0.0
    %407 = vmatpush1.xpose.msra.mxu0 0.0
    %408 = vmatprep.subr.mxu0 0.0
    %409 = vmatpush1.xpose.msra.mxu0 0.0
    %410 = vmatprep.subr.mxu0 0.0
    %411 = vmatpush1.xpose.msra.mxu0 0.0
    %412 = vmatprep.subr.mxu0 0.0
    %413 = vmatpush1.xpose.msra.mxu0 0.0
    %414 = vmatprep.subr.mxu0 0.0
    %415 = vmatpush1.xpose.msra.mxu0 0.0
    %416 = vmatprep.subr.mxu0 0.0
    %417 = vmatpush1.xpose.msra.mxu0 0.0
    %418 = vmatprep.subr.mxu0 0.0
    %419 = vmatpush1.xpose.msra.mxu0 0.0
    %v420 = vand.u32 %v28, 4294901760
    %421 = vmatprep.mubr.f32.mxu0 %v420
    %v422 = vand.u32 %v27, 4294901760
    %423 = vmatmul.mubr.f32.gmra.mrb[0].mxu0 %v422
    %v424 = vpop.f32.mrb[0].mxu0
    %v425 = vadd.f32 %v347, %v424
    %v426 = vpop.f32.mrb[0].mxu0
    %427 = vdwg.mxu0
    %v428 = vand.u32 %v28, 4294901760
    %429 = vmatprep.subr.mxu0 %v428
    %v430 = vand.u32 %v27, 4294901760
    %431 = vmatpush1.xpose.msra.mxu0 %v430
    %432 = vmatprep.subr.mxu0 0.0
    %433 = vmatpush1.xpose.msra.mxu0 0.0
    %434 = vmatprep.subr.mxu0 0.0
    %435 = vmatpush1.xpose.msra.mxu0 0.0
    %436 = vmatprep.subr.mxu0 0.0
    %437 = vmatpush1.xpose.msra.mxu0 0.0
    %438 = vmatprep.subr.mxu0 0.0
    %439 = vmatpush1.xpose.msra.mxu0 0.0
    %440 = vmatprep.subr.mxu0 0.0
    %441 = vmatpush1.xpose.msra.mxu0 0.0
    %442 = vmatprep.subr.mxu0 0.0
    %443 = vmatpush1.xpose.msra.mxu0 0.0
    %444 = vmatprep.subr.mxu0 0.0
    %445 = vmatpush1.xpose.msra.mxu0 0.0
    %446 = vmatprep.subr.mxu0 0.0
    %447 = vmatpush1.xpose.msra.mxu0 0.0
    %448 = vmatprep.subr.mxu0 0.0
    %449 = vmatpush1.xpose.msra.mxu0 0.0
    %450 = vmatprep.subr.mxu0 0.0
    %451 = vmatpush1.xpose.msra.mxu0 0.0
    %452 = vmatprep.subr.mxu0 0.0
    %453 = vmatpush1.xpose.msra.mxu0 0.0
    %454 = vmatprep.subr.mxu0 0.0
    %455 = vmatpush1.xpose.msra.mxu0 0.0
    %456 = vmatprep.subr.mxu0 0.0
    %457 = vmatpush1.xpose.msra.mxu0 0.0
    %458 = vmatprep.subr.mxu0 0.0
    %459 = vmatpush1.xpose.msra.mxu0 0.0
    %460 = vmatprep.subr.mxu0 0.0
    %461 = vmatpush1.xpose.msra.mxu0 0.0
    %462 = vmatprep.subr.mxu0 0.0
    %463 = vmatpush1.xpose.msra.mxu0 0.0
    %464 = vmatprep.subr.mxu0 0.0
    %465 = vmatpush1.xpose.msra.mxu0 0.0
    %466 = vmatprep.subr.mxu0 0.0
    %467 = vmatpush1.xpose.msra.mxu0 0.0
    %468 = vmatprep.subr.mxu0 0.0
    %469 = vmatpush1.xpose.msra.mxu0 0.0
    %470 = vmatprep.subr.mxu0 0.0
    %471 = vmatpush1.xpose.msra.mxu0 0.0
    %472 = vmatprep.subr.mxu0 0.0
    %473 = vmatpush1.xpose.msra.mxu0 0.0
    %474 = vmatprep.subr.mxu0 0.0
    %475 = vmatpush1.xpose.msra.mxu0 0.0
    %476 = vmatprep.subr.mxu0 0.0
    %477 = vmatpush1.xpose.msra.mxu0 0.0
    %478 = vmatprep.subr.mxu0 0.0
    %479 = vmatpush1.xpose.msra.mxu0 0.0
    %480 = vmatprep.subr.mxu0 0.0
    %481 = vmatpush1.xpose.msra.mxu0 0.0
    %482 = vmatprep.subr.mxu0 0.0
    %483 = vmatpush1.xpose.msra.mxu0 0.0
    %484 = vmatprep.subr.mxu0 0.0
    %485 = vmatpush1.xpose.msra.mxu0 0.0
    %486 = vmatprep.subr.mxu0 0.0
    %487 = vmatpush1.xpose.msra.mxu0 0.0
    %488 = vmatprep.subr.mxu0 0.0
    %489 = vmatpush1.xpose.msra.mxu0 0.0
    %490 = vmatprep.subr.mxu0 0.0
    %491 = vmatpush1.xpose.msra.mxu0 0.0
    %492 = vmatprep.subr.mxu0 0.0
    %493 = vmatpush1.xpose.msra.mxu0 0.0
    %v494 = vand.u32 %v28, 4294901760
    %495 = vmatprep.mubr.f32.mxu0 %v494
    %v496 = vand.u32 %v27, 4294901760
    %497 = vmatmul.mubr.f32.gmra.mrb[0].mxu0 %v496
    %v498 = vpop.f32.mrb[0].mxu0
    %v499 = vadd.f32 %v425, %v498
    %v500 = vpop.f32.mrb[0].mxu0
    %501 = vdwg.mxu0
    %v502 = vadd.f32 %v29, %v499
    %vm503 = vcmask 64512
    %504 = vst.msk [vmem:[#allocation5] sm:$0xff] %vm503, %v502
    // Predicated region
    $region14: #{tpu_custom_call.1} parent=1 // pred_check
      %p505 = pneg %p21
    $region15: #{tpu_custom_call.1} parent=1 // pred_check_branch
      %507 = sbr.rel (%p505) target = $region17
    $region16: #{tpu_custom_call.1} parent=1 // pred_region
      %v508 = vld [vmem:[#allocation5] sm:$0xff]
      %v509 = vmul.f32 %v508, 0.00048828125
      %510 = vst.msk [vmem:[#allocation5] sm:$0xff] %vm503, %v509
    $region17: #{tpu_custom_call.1} parent=1 // pred_fallthru
      _
    // Predicated region
    $region18: #{tpu_custom_call.1} parent=1 // pred_check
      _
    $region19: #{tpu_custom_call.1} parent=1 // pred_check_branch
      %512 = sbr.rel (0) target = $region21
    $region20: #{tpu_custom_call.1} parent=1 // pred_region
      %s514 = ssub.s32 128, 128
      %515 = vsyncadd [#allocation4], %s514
      %s517 = sshll.u32 [#allocation5], 4
      %s518 = int_to_ptr.vmem [resolvable:$true] %s517
      %520 = dma.vmem_to_hbm [thread:$0]  %s518, 128, %s1, [#allocation4]
    $region21: #{tpu_custom_call.1} parent=1 // pred_fallthru
      _
    // Predicated region
    $region22: #{tpu_custom_call.1} parent=1 // pred_check
      _
    $region23: #{tpu_custom_call.1} parent=1 // pred_check_branch
      %522 = sbr.rel (0) target = $region25
    $region24: #{tpu_custom_call.1} parent=1 // pred_region
      %523 = dma.done [#allocation4], 128
    $region25: #{tpu_custom_call.1} parent=1 // pred_fallthru
      _
    %524 = vsyncpa [#allocation3], 1
    %525 = vsyncpa [#allocation4], 1

</llo_original>
